<compile_context>
chip_gen: v7x
topology: tpu7x:2x2x1
jax: 0.10.0
libtpu: 0.0.40
codegen_flags: <defaults>
</compile_context>

<pallas_src>
import numpy as np
import jax
import jax.numpy as jnp
from jax.experimental import pallas as pl
from jax.experimental.pallas import tpu as pltpu

_MiB = 1024 * 1024
# Conservative double-buffered per-step VMEM budget; safe on v5e/v6e/v7x.
_VMEM_STEP_BUDGET = 24 * _MiB


def _compiler_params(**kw):
    cls = getattr(pltpu, "CompilerParams", None) or getattr(
        pltpu, "TPUCompilerParams", None)
    return cls(**kw) if cls is not None else None


def _sublane(dtype) -> int:
    """Minimum sublane multiple per dtype (f32: 8, bf16: 16, int8/fp8: 32)."""
    return max(8, 32 // np.dtype(dtype).itemsize)


def _concat_copy_kernel(*refs):
    """refs = (*input_tiles, out_tile); copy each input into its lane window."""
    *in_refs, o_ref = refs
    off = 0
    for r in in_refs:
        w = r.shape[-1]                      # static Python int
        o_ref[:, off:off + w] = r[...]       # lane-dense store (full block width)
        off += w


def _make_concat_dma_kernel(widths):
    """HBM->HBM path: one async DMA per input into its column window."""
    n = len(widths)

    def kernel(*refs):
        in_refs = refs[:n]
        o_ref = refs[n]
        sem = refs[n + 1]
        copies = []
        off = 0
        for i, (r, w) in enumerate(zip(in_refs, widths)):
            cp = pltpu.make_async_copy(r, o_ref.at[:, off:off + w], sem.at[i])
            cp.start()
            copies.append(cp)
            off += w
        for cp in copies:          # all DMA engines run concurrently
            cp.wait()

    return kernel


def pallas_concat(xs, dimension=1, *,
                  vmem_step_budget_bytes=_VMEM_STEP_BUDGET,
                  force_dma=False):
    """Equivalent of torch.cat(xs, dim=dimension) for same-rank JAX arrays."""
    assert len(xs) >= 1
    ndim = xs[0].ndim
    d = dimension if dimension >= 0 else dimension + ndim
    assert 0 <= d < ndim

    lead_shape = xs[0].shape[:d]
    tail_shape = xs[0].shape[d + 1:]
    dtype = xs[0].dtype
    for x in xs:
        assert x.ndim == ndim
        assert x.shape[:d] == lead_shape and x.shape[d + 1:] == tail_shape, (
            "all concat inputs must match on non-concat dims")
        assert x.dtype == dtype, "all concat inputs must share a dtype"

    lead = int(np.prod(lead_shape, dtype=np.int64)) if lead_shape else 1
    tail = int(np.prod(tail_shape, dtype=np.int64)) if tail_shape else 1
    itemsize = int(np.dtype(dtype).itemsize)

    # 2-D views: concat along dim d == concat of (lead, size_d*tail) slabs
    # along axis 1 (exact for row-major layout).
    widths = [int(x.shape[d]) * tail for x in xs]
    total = sum(widths)
    flats = [x.reshape(lead, w) for x, w in zip(xs, widths)]
    out_shape_nd = lead_shape + (sum(int(x.shape[d]) for x in xs),) + tail_shape

    total_bytes = lead * total * itemsize
    cost = pl.CostEstimate(flops=0, transcendentals=0,
                           bytes_accessed=2 * total_bytes)   # read + write

    # Generation-aware VMEM budgeting (falls back to conservative constants).
    try:
        phys = int(pltpu.get_tpu_info().vmem_capacity_bytes)
    except Exception:
        phys = 64 * _MiB                      # v7x per-TC physical VMEM
    step_budget = int(min(vmem_step_budget_bytes,
                          max(phys // 2 - 4 * _MiB, 4 * _MiB)))
    vmem_limit = int(min(step_budget + 16 * _MiB,
                         max(phys - 8 * _MiB, step_budget + 2 * _MiB)))

    # Per-step footprint: 2x (inputs + output) with double-buffering.
    bytes_per_row = 4 * total * itemsize
    max_rows = step_budget // bytes_per_row
    sub = _sublane(dtype)

    use_dma = force_dma or max_rows < min(lead, sub)

    if use_dma:
        # Rows too wide to tile in VMEM (or forced): pure HBM->HBM DMA, no
        # VMEM staging, all per-input copies in flight concurrently.
        out2d = pl.pallas_call(
            _make_concat_dma_kernel(widths),
            out_shape=jax.ShapeDtypeStruct((lead, total), dtype),
            in_specs=[pl.BlockSpec(memory_space=pl.ANY) for _ in flats],
            out_specs=pl.BlockSpec(memory_space=pl.ANY),
            scratch_shapes=[pltpu.SemaphoreType.DMA((len(flats),))],
            compiler_params=_compiler_params(vmem_limit_bytes=vmem_limit),
            cost_estimate=cost,
        )(*flats)
    else:
        # Pipelined row-tiled copy. tile_lead is a multiple of the sublane
        # count (or the full lead dim when lead is small), capped by the
        # VMEM budget and ~1024 rows (past which the pipeline gains flatten).
        tile_lead = min(lead, max_rows, 1024)
        if lead > sub:
            tile_lead = max(sub, (tile_lead // sub) * sub)
        grid = (pl.cdiv(lead, tile_lead),)

        in_specs = [pl.BlockSpec((tile_lead, w), lambda i: (i, 0))
                    for w in widths]
        out_specs = pl.BlockSpec((tile_lead, total), lambda i: (i, 0))

        out2d = pl.pallas_call(
            _concat_copy_kernel,
            out_shape=jax.ShapeDtypeStruct((lead, total), dtype),
            grid=grid,
            in_specs=in_specs,
            out_specs=out_specs,
            compiler_params=_compiler_params(
                dimension_semantics=("parallel",),
                vmem_limit_bytes=vmem_limit),
            cost_estimate=cost,
        )(*flats)

    return out2d.reshape(out_shape_nd)


if __name__ == "__main__":
    key = jax.random.PRNGKey(0)
    k1, k2, k3, k4, k5, k6, k7 = jax.random.split(key, 7)

    # 1) Typical Concat usage: channel concat of NCHW feature maps (dim=1).
    x1 = jax.random.normal(k1, (2, 4, 16, 16), dtype=jnp.float32)
    x2 = jax.random.normal(k2, (2, 4, 16, 16), dtype=jnp.float32)
    x3 = jax.random.normal(k3, (2, 8, 16, 16), dtype=jnp.float32)
    out = pallas_concat([x1, x2, x3], dimension=1)
    jax.block_until_ready(out)
    ref = jnp.concatenate([x1, x2, x3], axis=1)
    assert out.shape == (2, 16, 16, 16) and out.dtype == ref.dtype
    assert jnp.array_equal(out, ref)

    # 2) Larger batch with a deliberately small per-step budget -> multi-step
    #    pipelined grid (tile_lead=8 rows, 4 grid steps).
    y1 = jax.random.normal(k4, (32, 4, 8, 16), dtype=jnp.float32)
    y2 = jax.random.normal(k5, (32, 4, 8, 16), dtype=jnp.float32)
    out2 = pallas_concat([y1, y2], dimension=1,
                         vmem_step_budget_bytes=160 * 1024)
    jax.block_until_ready(out2)
    assert jnp.array_equal(out2, jnp.concatenate([y1, y2], axis=1))

    # 3) Concat along the last dim with bf16 (uneven lane widths still exact).
    z1 = jax.random.normal(k6, (4, 8, 128), dtype=jnp.bfloat16)
    z2 = jax.random.normal(k7, (4, 8, 64), dtype=jnp.bfloat16)
    out3 = pallas_concat([z1, z2], dimension=-1)
    jax.block_until_ready(out3)
    assert jnp.array_equal(out3, jnp.concatenate([z1, z2], axis=-1))

    print("KERNEL_OK")
</pallas_src>

<mosaic_0001>
module attributes {stable_mosaic.version = 11 : i64} {
  func.func @_concat_copy_kernel(%arg0: i32, %arg1: memref<2x1024xf32, #tpu.memory_space<vmem>>, %arg2: memref<2x1024xf32, #tpu.memory_space<vmem>>, %arg3: memref<2x2048xf32, #tpu.memory_space<vmem>>, %arg4: memref<2x4096xf32, #tpu.memory_space<vmem>>) attributes {dimension_semantics = [#tpu.dimension_semantics<parallel>], iteration_bounds = array<i64: 1>, scalar_prefetch = 0 : i64, scratch_operands = 0 : i64, tpu.core_type = #tpu.core_type<tc>, window_params = [{transform_indices = @transform_0, window_bounds = array<i64: 2, 1024>}, {transform_indices = @transform_1, window_bounds = array<i64: 2, 1024>}, {transform_indices = @transform_2, window_bounds = array<i64: 2, 2048>}, {transform_indices = @transform_3, window_bounds = array<i64: 2, 4096>}]} {
    %c0 = arith.constant 0 : index
    %c0_0 = arith.constant 0 : index
    %0 = vector.load %arg1[%c0, %c0_0] : memref<2x1024xf32, #tpu.memory_space<vmem>>, vector<2x1024xf32>
    %c0_1 = arith.constant 0 : index
    %c0_2 = arith.constant 0 : index
    %1 = vector.load %arg4[%c0_1, %c0_2] : memref<2x4096xf32, #tpu.memory_space<vmem>>, vector<2x1024xf32>
    tpu.vector_store %arg4[%c0_1, %c0_2], %0 {strides = array<i32>} : memref<2x4096xf32, #tpu.memory_space<vmem>>, vector<2x1024xf32>,
    %c0_3 = arith.constant 0 : index
    %c0_4 = arith.constant 0 : index
    %2 = vector.load %arg2[%c0_3, %c0_4] : memref<2x1024xf32, #tpu.memory_space<vmem>>, vector<2x1024xf32>
    %c0_5 = arith.constant 0 : index
    %c1024 = arith.constant 1024 : index
    %3 = vector.load %arg4[%c0_5, %c1024] : memref<2x4096xf32, #tpu.memory_space<vmem>>, vector<2x1024xf32>
    tpu.vector_store %arg4[%c0_5, %c1024], %2 {strides = array<i32>} : memref<2x4096xf32, #tpu.memory_space<vmem>>, vector<2x1024xf32>,
    %c0_6 = arith.constant 0 : index
    %c0_7 = arith.constant 0 : index
    %4 = vector.load %arg3[%c0_6, %c0_7] : memref<2x2048xf32, #tpu.memory_space<vmem>>, vector<2x2048xf32>
    %c0_8 = arith.constant 0 : index
    %c2048 = arith.constant 2048 : index
    %5 = vector.load %arg4[%c0_8, %c2048] : memref<2x4096xf32, #tpu.memory_space<vmem>>, vector<2x2048xf32>
    tpu.vector_store %arg4[%c0_8, %c2048], %4 {strides = array<i32>} : memref<2x4096xf32, #tpu.memory_space<vmem>>, vector<2x2048xf32>,
    return
  }
  func.func @transform_0(%arg0: i32) -> (i32, i32) {
    %c0_i32 = arith.constant 0 : i32
    %c0_i32_0 = arith.constant 0 : i32
    return %arg0, %c0_i32 : i32, i32
  }
  func.func @transform_1(%arg0: i32) -> (i32, i32) {
    %c0_i32 = arith.constant 0 : i32
    %c0_i32_0 = arith.constant 0 : i32
    return %arg0, %c0_i32 : i32, i32
  }
  func.func @transform_2(%arg0: i32) -> (i32, i32) {
    %c0_i32 = arith.constant 0 : i32
    %c0_i32_0 = arith.constant 0 : i32
    return %arg0, %c0_i32 : i32, i32
  }
  func.func @transform_3(%arg0: i32) -> (i32, i32) {
    %c0_i32 = arith.constant 0 : i32
    %c0_i32_0 = arith.constant 0 : i32
    return %arg0, %c0_i32 : i32, i32
  }
}

</mosaic_0001>

<llo_original>
// kernel: tpu_custom_call.1
$region0: #{tpu_custom_call.1}
  #allocation0 [shape = 'u32[]', space=smem, size = 0x4, offset = 0x4, fixed_abs, tag = 'smem constant byte address 0x4 - core index']
  #allocation1 [shape = 'u32[144,128]{1,0:T(1,128)}', space=vmem, size = 0x12000, scoped, tag = 'internal scratch']
  %s0 = inlined_call_operand.hbm [shape: f32[2,1024], index: 0, kind: input, shape index: {}]
  %s1 = inlined_call_operand.hbm [shape: f32[2,1024], index: 1, kind: input, shape index: {}]
  %s2 = inlined_call_operand.hbm [shape: f32[2,2048], index: 2, kind: input, shape index: {}]
  %s3 = inlined_call_operand.hbm [shape: f32[2,4096], index: 3, kind: output, shape index: {}]
  %s4 = sld [smem:[#allocation0]]
  $region34: #{tpu_custom_call.1} parent=0
    _
  %s6 = ssub.s32 1, %s4
  %s7 = scalar_select 0, %s6, %s4
  $region1: #{tpu_custom_call.1} parent=0
    #allocation2 [shape = 'u8[8192]{0}', space=vmem, size = 0x2000, scoped, tag = 'input window, operand 0, single buffered']
    #allocation3 [shape = 's32[1]{0}', space=sflag, size = 0x4, scoped, tag = 'scoped memory for tpu_custom_call.1']
    #allocation4 [shape = 's32[1]{0}', space=sflag, size = 0x4, scoped, tag = 'scoped memory for tpu_custom_call.1']
    #allocation5 [shape = 'u8[8192]{0}', space=vmem, size = 0x2000, scoped, tag = 'input window, operand 1, single buffered']
    #allocation6 [shape = 's32[1]{0}', space=sflag, size = 0x4, scoped, tag = 'scoped memory for tpu_custom_call.1']
    #allocation7 [shape = 'u8[16384]{0}', space=vmem, size = 0x4000, scoped, tag = 'input window, operand 2, single buffered']
    #allocation8 [shape = 'u8[32768]{0}', space=vmem, size = 0x8000, scoped, tag = 'output window, operand 0, single buffered']
    %8 = vsyncpa [#allocation3], 0
    %9 = vsyncpa [#allocation6], 0
    %10 = vsyncpa [#allocation4], 0
    // Predicated region
    $region2: #{tpu_custom_call.1} parent=1 // pred_check
      _
    $region3: #{tpu_custom_call.1} parent=1 // pred_check_branch
      %12 = sbr.rel (0) target = $region5
    $region4: #{tpu_custom_call.1} parent=1 // pred_region
      %s14 = ssub.s32 256, 256
      %15 = vsyncadd [#allocation3], %s14
      %s17 = sshll.u32 [#allocation2], 4
      %s18 = int_to_ptr.vmem [resolvable:$true] %s17
      %20 = dma.hbm_to_vmem [thread:$0]  %s0, 256, %s18, [#allocation3]
    $region5: #{tpu_custom_call.1} parent=1 // pred_fallthru
      _
    // Predicated region
    $region6: #{tpu_custom_call.1} parent=1 // pred_check
      _
    $region7: #{tpu_custom_call.1} parent=1 // pred_check_branch
      %22 = sbr.rel (0) target = $region9
    $region8: #{tpu_custom_call.1} parent=1 // pred_region
      %s24 = ssub.s32 256, 256
      %25 = vsyncadd [#allocation6], %s24
      %s27 = sshll.u32 [#allocation5], 4
      %s28 = int_to_ptr.vmem [resolvable:$true] %s27
      %30 = dma.hbm_to_vmem [thread:$0]  %s1, 256, %s28, [#allocation6]
    $region9: #{tpu_custom_call.1} parent=1 // pred_fallthru
      _
    // Predicated region
    $region10: #{tpu_custom_call.1} parent=1 // pred_check
      _
    $region11: #{tpu_custom_call.1} parent=1 // pred_check_branch
      %32 = sbr.rel (0) target = $region13
    $region12: #{tpu_custom_call.1} parent=1 // pred_region
      %s34 = ssub.s32 512, 512
      %35 = vsyncadd [#allocation6], %s34
      %s37 = sshll.u32 [#allocation7], 4
      %s38 = int_to_ptr.vmem [resolvable:$true] %s37
      %40 = dma.hbm_to_vmem [thread:$0]  %s2, 512, %s38, [#allocation6]
    $region13: #{tpu_custom_call.1} parent=1 // pred_fallthru
      _
    // Predicated region
    $region14: #{tpu_custom_call.1} parent=1 // pred_check
      _
    $region15: #{tpu_custom_call.1} parent=1 // pred_check_branch
      %42 = sbr.rel (0) target = $region17
    $region16: #{tpu_custom_call.1} parent=1 // pred_region
      %43 = dma.done [#allocation3], 256
    $region17: #{tpu_custom_call.1} parent=1 // pred_fallthru
      _
    // Predicated region
    $region18: #{tpu_custom_call.1} parent=1 // pred_check
      _
    $region19: #{tpu_custom_call.1} parent=1 // pred_check_branch
      %45 = sbr.rel (0) target = $region21
    $region20: #{tpu_custom_call.1} parent=1 // pred_region
      %46 = dma.done [#allocation6], 256
    $region21: #{tpu_custom_call.1} parent=1 // pred_fallthru
      _
    // Predicated region
    $region22: #{tpu_custom_call.1} parent=1 // pred_check
      _
    $region23: #{tpu_custom_call.1} parent=1 // pred_check_branch
      %48 = sbr.rel (0) target = $region25
    $region24: #{tpu_custom_call.1} parent=1 // pred_region
      %49 = dma.done [#allocation6], 512
    $region25: #{tpu_custom_call.1} parent=1 // pred_fallthru
      _
    %v50 = vld [vmem:[#allocation2] sm:$0xff]
    %v51 = vld [vmem:[#allocation2 + $0x8] sm:$0xff]
    %52 = vst [vmem:[#allocation8] sm:$0xff] %v50
    %53 = vst [vmem:[#allocation8 + $0x8] sm:$0xff] %v51
    %v54 = vld [vmem:[#allocation5] sm:$0xff]
    %v55 = vld [vmem:[#allocation5 + $0x8] sm:$0xff]
    %56 = vst [vmem:[#allocation8 + $0x10] sm:$0xff] %v54
    %57 = vst [vmem:[#allocation8 + $0x18] sm:$0xff] %v55
    %v58 = vld [vmem:[#allocation7] sm:$0xff]
    %v59 = vld [vmem:[#allocation7 + $0x8] sm:$0xff]
    %v60 = vld [vmem:[#allocation7 + $0x10] sm:$0xff]
    %v61 = vld [vmem:[#allocation7 + $0x18] sm:$0xff]
    %62 = vst [vmem:[#allocation8 + $0x20] sm:$0xff] %v58
    %63 = vst [vmem:[#allocation8 + $0x28] sm:$0xff] %v59
    %64 = vst [vmem:[#allocation8 + $0x30] sm:$0xff] %v60
    %65 = vst [vmem:[#allocation8 + $0x38] sm:$0xff] %v61
    // Predicated region
    $region26: #{tpu_custom_call.1} parent=1 // pred_check
      _
    $region27: #{tpu_custom_call.1} parent=1 // pred_check_branch
      %67 = sbr.rel (0) target = $region29
    $region28: #{tpu_custom_call.1} parent=1 // pred_region
      %s69 = ssub.s32 1024, 1024
      %70 = vsyncadd [#allocation4], %s69
      %s72 = sshll.u32 [#allocation8], 4
      %s73 = int_to_ptr.vmem [resolvable:$true] %s72
      %75 = dma.vmem_to_hbm [thread:$0]  %s73, 1024, %s3, [#allocation4]
    $region29: #{tpu_custom_call.1} parent=1 // pred_fallthru
      _
    // Predicated region
    $region30: #{tpu_custom_call.1} parent=1 // pred_check
      _
    $region31: #{tpu_custom_call.1} parent=1 // pred_check_branch
      %77 = sbr.rel (0) target = $region33
    $region32: #{tpu_custom_call.1} parent=1 // pred_region
      %78 = dma.done [#allocation4], 1024
    $region33: #{tpu_custom_call.1} parent=1 // pred_fallthru
      _
    %79 = vsyncpa [#allocation3], 1
    %80 = vsyncpa [#allocation6], 1
    %81 = vsyncpa [#allocation4], 1

</llo_original>
